<compile_context>
chip_gen: v6e
topology: v6e:2x2x1
jax: 0.10.0
libtpu: 0.0.40
codegen_flags: <defaults>
</compile_context>

<pallas_src>
import functools
import math

import numpy as np
import jax
import jax.numpy as jnp
from jax import lax
from jax.experimental import pallas as pl
from jax.experimental.pallas import tpu as pltpu


# ----------------------------------------------------------------------------
# Fused GhostModule kernel
# ----------------------------------------------------------------------------

def _ghost_kernel(x_ref, w1_ref, mw_ref, b2_ref, o_ref, *,
                  width, c1, keep_cheap, nb):
    """Fused GhostModule forward for `nb` images (packed along sublanes).

    Layout: channels in rows (sublanes), flattened pixels H*W in lanes.
      x_ref  : (nb, Cin+1, P) bf16  input images; last channel row is constant 1.0
                                     (BN1 bias folded into the matmul)
      w1_ref : (C1, Cin+1)    bf16  1x1 primary-conv weight, BN1 folded, last col = b1
      mw_ref : (9, Cn, P)     f32   per-tap (boundary mask * depthwise weight), BN2 folded
      b2_ref : (Cn, 1)        f32   BN2 folded bias
      o_ref  : (nb, oup, P)         cat([x1, x2], channel)[:oup] per image
    """
    p = x_ref.shape[-1]
    for b in range(nb):  # static unroll over the images packed into this grid step
        # --- primary_conv: 1x1 conv (+BN, bias folded in) + ReLU -- MXU, bf16/f32 acc.
        x1 = jnp.dot(w1_ref[...], x_ref[b],
                     preferred_element_type=jnp.float32)          # (C1, P)
        x1 = jnp.maximum(x1, 0.0)

        # --- cheap_operation: depthwise 3x3 (+BN) + ReLU, stride 1, zero pad 1.
        # Each tap is a static lane roll; boundary mask and per-channel weight are
        # pre-merged in mw_ref, so each tap is a single multiply-add.
        if keep_cheap > 0:
            acc = x1 * mw_ref[4]                                  # center tap (mask==1)
            tap = 0
            for dy in (-1, 0, 1):
                for dx in (-1, 0, 1):
                    k = dy * width + dx                           # flat pixel offset
                    if k != 0:
                        acc = acc + pltpu.roll(x1, (-k) % p, axis=1) * mw_ref[tap]
                    tap += 1
            x2 = jnp.maximum(acc + b2_ref[...], 0.0)              # (Cn, P)

        # --- torch.cat([x1, x2], dim=1)[:, :oup]: two direct aligned stores (no concat).
        o_ref[b, :c1, :] = x1.astype(o_ref.dtype)
        if keep_cheap > 0:
            o_ref[b, c1:c1 + keep_cheap, :] = x2[:keep_cheap, :].astype(o_ref.dtype)


# ----------------------------------------------------------------------------
# Host-side helpers
# ----------------------------------------------------------------------------

BN_EPS = 1e-5


def _fold_bn(w, bn, eps=BN_EPS):
    """Fold eval-mode BatchNorm into the preceding (bias-free) conv weight."""
    scale = bn["gamma"] / jnp.sqrt(bn["var"] + eps)               # (Cout,)
    return w * scale[:, None], bn["beta"] - bn["mean"] * scale


def _tap_masks(height, width):
    """0/1 validity masks for the 9 depthwise taps (zero padding = 1)."""
    hh, ww = np.meshgrid(np.arange(height), np.arange(width), indexing="ij")
    masks = np.zeros((9, height * width), np.float32)
    t = 0
    for dy in (-1, 0, 1):
        for dx in (-1, 0, 1):
            valid = ((hh + dy >= 0) & (hh + dy < height) &
                     (ww + dx >= 0) & (ww + dx < width))
            masks[t] = valid.reshape(-1).astype(np.float32)
            t += 1
    return jnp.asarray(masks)


def ghost_module_forward(params, x_nchw, *, oup, images_per_step=None,
                         out_dtype=jnp.float32):
    """GhostModule forward (defaults: kernel_size=1, ratio=2, dw_size=3, stride=1)."""
    n, cin, h, w = x_nchw.shape
    c1 = params["w_primary"].shape[0]        # init_channels
    cn = params["w_cheap"].shape[0]          # new_channels (== c1 for ratio=2)
    assert params["w_primary"].shape[1] == cin
    assert cn == c1, "only ratio=2 (new_channels == init_channels) is implemented"
    keep_cheap = oup - c1
    assert 0 <= keep_cheap <= cn
    p = h * w

    # Images packed per grid step. Default keeps a 2-way "parallel" grid (both v7x
    # TensorCores); on single-TC v5e/v6e pass images_per_step=n for one fat step.
    if images_per_step is None:
        images_per_step = max(1, math.ceil(n / 2))
    nb = min(images_per_step, n)
    n_steps = math.ceil(n / nb)
    n_pad = n_steps * nb

    w1, b1 = _fold_bn(params["w_primary"], params["bn1"])
    w2, b2 = _fold_bn(params["w_cheap"], params["bn2"])

    # BN1 bias folded into the MXU contraction: extra constant-1 input channel.
    w1_aug = jnp.concatenate([w1, b1[:, None]], axis=1).astype(jnp.bfloat16)  # (C1, Cin+1)

    # Merge boundary masks and depthwise weights into one per-tap table.
    masks = _tap_masks(h, w)                                       # (9, P)
    mw = masks[:, None, :] * jnp.transpose(w2)[:, :, None]         # (9, Cn, P) f32

    # bf16 activation + constant-1 bias row (one small fused XLA cast/pad, halves
    # the per-step input DMA bytes into the kernel).
    x_flat = x_nchw.reshape(n, cin, p).astype(jnp.bfloat16)
    ones = jnp.ones((n, 1, p), jnp.bfloat16)
    x_aug = jnp.concatenate([x_flat, ones], axis=1)                # (n, Cin+1, P)
    if n_pad != n:
        x_aug = jnp.pad(x_aug, ((0, n_pad - n), (0, 0), (0, 0)))

    out = pl.pallas_call(
        functools.partial(_ghost_kernel, width=w, c1=c1,
                          keep_cheap=keep_cheap, nb=nb),
        out_shape=jax.ShapeDtypeStruct((n_pad, oup, p), out_dtype),
        grid=(n_steps,),
        in_specs=[
            pl.BlockSpec((nb, cin + 1, p), lambda i: (i, 0, 0)),   # packed input images
            pl.BlockSpec((c1, cin + 1), lambda i: (0, 0)),         # resident weights
            pl.BlockSpec((9, cn, p), lambda i: (0, 0, 0)),         # mask*weight taps
            pl.BlockSpec((cn, 1), lambda i: (0, 0)),
        ],
        out_specs=pl.BlockSpec((nb, oup, p), lambda i: (i, 0, 0)),
        compiler_params=pltpu.CompilerParams(
            dimension_semantics=("parallel",)),                    # shard steps over TCs
    )(x_aug, w1_aug, mw, b2.reshape(cn, 1))

    return out[:n].reshape(n, oup, h, w)                           # free reshape -> NCHW


# ----------------------------------------------------------------------------
# Parameter init (PyTorch-like defaults; BN at its default eval statistics)
# ----------------------------------------------------------------------------

def init_ghost_params(key, inp, oup, kernel_size=1, ratio=2, dw_size=3):
    assert kernel_size == 1 and ratio == 2 and dw_size == 3, (
        "only the default GhostModule configuration is implemented")
    init_channels = math.ceil(oup / ratio)
    new_channels = init_channels * (ratio - 1)

    k1, k2 = jax.random.split(key)
    bound1 = 1.0 / math.sqrt(inp * kernel_size * kernel_size)
    w_primary = jax.random.uniform(k1, (init_channels, inp), jnp.float32,
                                   -bound1, bound1)
    bound2 = 1.0 / math.sqrt(dw_size * dw_size)                    # depthwise fan_in
    w_cheap = jax.random.uniform(k2, (new_channels, dw_size * dw_size), jnp.float32,
                                 -bound2, bound2)

    def bn_defaults(c):
        return {"gamma": jnp.ones((c,), jnp.float32),
                "beta": jnp.zeros((c,), jnp.float32),
                "mean": jnp.zeros((c,), jnp.float32),
                "var": jnp.ones((c,), jnp.float32)}

    return {"w_primary": w_primary, "w_cheap": w_cheap,
            "bn1": bn_defaults(init_channels), "bn2": bn_defaults(new_channels)}


# ----------------------------------------------------------------------------
# Pure-JAX reference (for an on-device correctness check)
# ----------------------------------------------------------------------------

def ghost_module_reference(params, x_nchw, *, oup):
    c1 = params["w_primary"].shape[0]
    cn = params["w_cheap"].shape[0]
    cin = params["w_primary"].shape[1]
    w1, b1 = _fold_bn(params["w_primary"], params["bn1"])
    w2, b2 = _fold_bn(params["w_cheap"], params["bn2"])

    # Match the kernel's bf16 MXU inputs for the primary conv (bias folded through bf16).
    xb = x_nchw.astype(jnp.bfloat16).astype(jnp.float32)
    w1b = w1.astype(jnp.bfloat16).astype(jnp.float32)
    b1b = b1.astype(jnp.bfloat16).astype(jnp.float32)

    x1 = lax.conv_general_dilated(
        xb, w1b.reshape(c1, cin, 1, 1), (1, 1), "VALID",
        dimension_numbers=("NCHW", "OIHW", "NCHW"),
        precision=lax.Precision.HIGHEST)
    x1 = jnp.maximum(x1 + b1b.reshape(1, c1, 1, 1), 0.0)

    x2 = lax.conv_general_dilated(
        x1, w2.reshape(cn, 1, 3, 3), (1, 1), ((1, 1), (1, 1)),
        dimension_numbers=("NCHW", "OIHW", "NCHW"),
        feature_group_count=c1, precision=lax.Precision.HIGHEST)
    x2 = jnp.maximum(x2 + b2.reshape(1, cn, 1, 1), 0.0)

    return jnp.concatenate([x1, x2], axis=1)[:, :oup]


# ----------------------------------------------------------------------------

if __name__ == "__main__":
    key = jax.random.PRNGKey(0)
    kx, kp = jax.random.split(key)

    N, Cin, H, W = 4, 4, 16, 16
    OUP = 32                                                      # GhostModule(inp=4, oup=32)

    x = jax.random.normal(kx, (N, Cin, H, W), jnp.float32)        # NCHW, like PyTorch
    params = init_ghost_params(kp, inp=Cin, oup=OUP)

    # Default: 2 images packed per grid step, 2 parallel grid steps.
    fwd = jax.jit(functools.partial(ghost_module_forward, oup=OUP))
    y = jax.block_until_ready(fwd(params, x))

    assert y.shape == (N, OUP, H, W)
    assert bool(jnp.all(jnp.isfinite(y)))

    # On-device correctness check against a pure-JAX reference.
    y_ref = jax.block_until_ready(ghost_module_reference(params, x, oup=OUP))
    np.testing.assert_allclose(np.asarray(y), np.asarray(y_ref), rtol=2e-3, atol=2e-3)

    print("KERNEL_OK")
</pallas_src>

<mosaic_0001>
module attributes {stable_mosaic.version = 11 : i64} {
  func.func @_ghost_kernel(%arg0: i32, %arg1: memref<2x5x256xbf16, #tpu.memory_space<vmem>>, %arg2: memref<16x5xbf16, #tpu.memory_space<vmem>>, %arg3: memref<9x16x256xf32, #tpu.memory_space<vmem>>, %arg4: memref<16x1xf32, #tpu.memory_space<vmem>>, %arg5: memref<2x32x256xf32, #tpu.memory_space<vmem>>) attributes {dimension_semantics = [#tpu.dimension_semantics<parallel>], iteration_bounds = array<i64: 2>, scalar_prefetch = 0 : i64, scratch_operands = 0 : i64, tpu.core_type = #tpu.core_type<tc>, window_params = [{transform_indices = @transform_0, window_bounds = array<i64: 2, 5, 256>}, {pipeline_mode = #tpu.pipeline_mode<synchronous>, transform_indices = @transform_1, window_bounds = array<i64: 16, 5>}, {pipeline_mode = #tpu.pipeline_mode<synchronous>, transform_indices = @transform_2, window_bounds = array<i64: 9, 16, 256>}, {pipeline_mode = #tpu.pipeline_mode<synchronous>, transform_indices = @transform_3, window_bounds = array<i64: 16, 1>}, {transform_indices = @transform_4, window_bounds = array<i64: 2, 32, 256>}]} {
    %c0 = arith.constant 0 : index
    %c0_0 = arith.constant 0 : index
    %0 = vector.load %arg2[%c0, %c0_0] : memref<16x5xbf16, #tpu.memory_space<vmem>>, vector<16x5xbf16>
    %c0_1 = arith.constant 0 : index
    %c0_2 = arith.constant 0 : index
    %c0_3 = arith.constant 0 : index
    %1 = vector.load %arg1[%c0_1, %c0_2, %c0_3] : memref<2x5x256xbf16, #tpu.memory_space<vmem>>, vector<1x5x256xbf16>
    %2 = vector.shape_cast %1 : vector<1x5x256xbf16> to vector<5x256xbf16>
    %cst = arith.constant dense<0.000000e+00> : vector<16x256xf32>
    %3 = tpu.matmul %0, %2, %cst {dimension_numbers = #tpu.dot_dimension_numbers<[1], [0], [0], [1], [0, 0, 1, 1], [], []>} : vector<16x5xbf16>, vector<5x256xbf16>, vector<16x256xf32> -> vector<16x256xf32>
    %cst_4 = arith.constant 0.000000e+00 : f32
    %4 = vector.broadcast %cst_4 : f32 to vector<16x256xf32>
    %5 = arith.maximumf %3, %4 : vector<16x256xf32>
    %c4 = arith.constant 4 : index
    %c0_5 = arith.constant 0 : index
    %c0_6 = arith.constant 0 : index
    %6 = vector.load %arg3[%c4, %c0_5, %c0_6] : memref<9x16x256xf32, #tpu.memory_space<vmem>>, vector<1x16x256xf32>
    %7 = vector.shape_cast %6 : vector<1x16x256xf32> to vector<16x256xf32>
    %8 = arith.mulf %5, %7 : vector<16x256xf32>
    %c17_i32 = arith.constant 17 : i32
    %9 = tpu.dynamic_rotate %5 by %c17_i32 dim 1 : vector<16x256xf32>, i32 -> vector<16x256xf32>
    %c0_7 = arith.constant 0 : index
    %c0_8 = arith.constant 0 : index
    %c0_9 = arith.constant 0 : index
    %10 = vector.load %arg3[%c0_7, %c0_8, %c0_9] : memref<9x16x256xf32, #tpu.memory_space<vmem>>, vector<1x16x256xf32>
    %11 = vector.shape_cast %10 : vector<1x16x256xf32> to vector<16x256xf32>
    %12 = arith.mulf %9, %11 : vector<16x256xf32>
    %13 = arith.addf %8, %12 : vector<16x256xf32>
    %c16_i32 = arith.constant 16 : i32
    %14 = tpu.dynamic_rotate %5 by %c16_i32 dim 1 : vector<16x256xf32>, i32 -> vector<16x256xf32>
    %c1 = arith.constant 1 : index
    %c0_10 = arith.constant 0 : index
    %c0_11 = arith.constant 0 : index
    %15 = vector.load %arg3[%c1, %c0_10, %c0_11] : memref<9x16x256xf32, #tpu.memory_space<vmem>>, vector<1x16x256xf32>
    %16 = vector.shape_cast %15 : vector<1x16x256xf32> to vector<16x256xf32>
    %17 = arith.mulf %14, %16 : vector<16x256xf32>
    %18 = arith.addf %13, %17 : vector<16x256xf32>
    %c15_i32 = arith.constant 15 : i32
    %19 = tpu.dynamic_rotate %5 by %c15_i32 dim 1 : vector<16x256xf32>, i32 -> vector<16x256xf32>
    %c2 = arith.constant 2 : index
    %c0_12 = arith.constant 0 : index
    %c0_13 = arith.constant 0 : index
    %20 = vector.load %arg3[%c2, %c0_12, %c0_13] : memref<9x16x256xf32, #tpu.memory_space<vmem>>, vector<1x16x256xf32>
    %21 = vector.shape_cast %20 : vector<1x16x256xf32> to vector<16x256xf32>
    %22 = arith.mulf %19, %21 : vector<16x256xf32>
    %23 = arith.addf %18, %22 : vector<16x256xf32>
    %c1_i32 = arith.constant 1 : i32
    %24 = tpu.dynamic_rotate %5 by %c1_i32 dim 1 : vector<16x256xf32>, i32 -> vector<16x256xf32>
    %c3 = arith.constant 3 : index
    %c0_14 = arith.constant 0 : index
    %c0_15 = arith.constant 0 : index
    %25 = vector.load %arg3[%c3, %c0_14, %c0_15] : memref<9x16x256xf32, #tpu.memory_space<vmem>>, vector<1x16x256xf32>
    %26 = vector.shape_cast %25 : vector<1x16x256xf32> to vector<16x256xf32>
    %27 = arith.mulf %24, %26 : vector<16x256xf32>
    %28 = arith.addf %23, %27 : vector<16x256xf32>
    %c255_i32 = arith.constant 255 : i32
    %29 = tpu.dynamic_rotate %5 by %c255_i32 dim 1 : vector<16x256xf32>, i32 -> vector<16x256xf32>
    %c5 = arith.constant 5 : index
    %c0_16 = arith.constant 0 : index
    %c0_17 = arith.constant 0 : index
    %30 = vector.load %arg3[%c5, %c0_16, %c0_17] : memref<9x16x256xf32, #tpu.memory_space<vmem>>, vector<1x16x256xf32>
    %31 = vector.shape_cast %30 : vector<1x16x256xf32> to vector<16x256xf32>
    %32 = arith.mulf %29, %31 : vector<16x256xf32>
    %33 = arith.addf %28, %32 : vector<16x256xf32>
    %c241_i32 = arith.constant 241 : i32
    %34 = tpu.dynamic_rotate %5 by %c241_i32 dim 1 : vector<16x256xf32>, i32 -> vector<16x256xf32>
    %c6 = arith.constant 6 : index
    %c0_18 = arith.constant 0 : index
    %c0_19 = arith.constant 0 : index
    %35 = vector.load %arg3[%c6, %c0_18, %c0_19] : memref<9x16x256xf32, #tpu.memory_space<vmem>>, vector<1x16x256xf32>
    %36 = vector.shape_cast %35 : vector<1x16x256xf32> to vector<16x256xf32>
    %37 = arith.mulf %34, %36 : vector<16x256xf32>
    %38 = arith.addf %33, %37 : vector<16x256xf32>
    %c240_i32 = arith.constant 240 : i32
    %39 = tpu.dynamic_rotate %5 by %c240_i32 dim 1 : vector<16x256xf32>, i32 -> vector<16x256xf32>
    %c7 = arith.constant 7 : index
    %c0_20 = arith.constant 0 : index
    %c0_21 = arith.constant 0 : index
    %40 = vector.load %arg3[%c7, %c0_20, %c0_21] : memref<9x16x256xf32, #tpu.memory_space<vmem>>, vector<1x16x256xf32>
    %41 = vector.shape_cast %40 : vector<1x16x256xf32> to vector<16x256xf32>
    %42 = arith.mulf %39, %41 : vector<16x256xf32>
    %43 = arith.addf %38, %42 : vector<16x256xf32>
    %c239_i32 = arith.constant 239 : i32
    %44 = tpu.dynamic_rotate %5 by %c239_i32 dim 1 : vector<16x256xf32>, i32 -> vector<16x256xf32>
    %c8 = arith.constant 8 : index
    %c0_22 = arith.constant 0 : index
    %c0_23 = arith.constant 0 : index
    %45 = vector.load %arg3[%c8, %c0_22, %c0_23] : memref<9x16x256xf32, #tpu.memory_space<vmem>>, vector<1x16x256xf32>
    %46 = vector.shape_cast %45 : vector<1x16x256xf32> to vector<16x256xf32>
    %47 = arith.mulf %44, %46 : vector<16x256xf32>
    %48 = arith.addf %43, %47 : vector<16x256xf32>
    %c0_24 = arith.constant 0 : index
    %c0_25 = arith.constant 0 : index
    %49 = vector.load %arg4[%c0_24, %c0_25] : memref<16x1xf32, #tpu.memory_space<vmem>>, vector<16x1xf32>
    %50 = vector.broadcast %49 : vector<16x1xf32> to vector<16x256xf32>
    %51 = arith.addf %48, %50 : vector<16x256xf32>
    %cst_26 = arith.constant 0.000000e+00 : f32
    %52 = vector.broadcast %cst_26 : f32 to vector<16x256xf32>
    %53 = arith.maximumf %51, %52 : vector<16x256xf32>
    %c0_27 = arith.constant 0 : index
    %c0_28 = arith.constant 0 : index
    %c0_29 = arith.constant 0 : index
    %54 = vector.load %arg5[%c0_27, %c0_28, %c0_29] : memref<2x32x256xf32, #tpu.memory_space<vmem>>, vector<1x16x256xf32>
    %55 = vector.shape_cast %54 : vector<1x16x256xf32> to vector<16x256xf32>
    %56 = vector.shape_cast %5 : vector<16x256xf32> to vector<1x16x256xf32>
    tpu.vector_store %arg5[%c0_27, %c0_28, %c0_29], %56 {strides = array<i32>} : memref<2x32x256xf32, #tpu.memory_space<vmem>>, vector<1x16x256xf32>,
    %c0_30 = arith.constant 0 : index
    %c16 = arith.constant 16 : index
    %c0_31 = arith.constant 0 : index
    %57 = vector.load %arg5[%c0_30, %c16, %c0_31] : memref<2x32x256xf32, #tpu.memory_space<vmem>>, vector<1x16x256xf32>
    %58 = vector.shape_cast %57 : vector<1x16x256xf32> to vector<16x256xf32>
    %59 = vector.shape_cast %53 : vector<16x256xf32> to vector<1x16x256xf32>
    tpu.vector_store %arg5[%c0_30, %c16, %c0_31], %59 {strides = array<i32>} : memref<2x32x256xf32, #tpu.memory_space<vmem>>, vector<1x16x256xf32>,
    %c0_32 = arith.constant 0 : index
    %c0_33 = arith.constant 0 : index
    %60 = vector.load %arg2[%c0_32, %c0_33] : memref<16x5xbf16, #tpu.memory_space<vmem>>, vector<16x5xbf16>
    %c1_34 = arith.constant 1 : index
    %c0_35 = arith.constant 0 : index
    %c0_36 = arith.constant 0 : index
    %61 = vector.load %arg1[%c1_34, %c0_35, %c0_36] : memref<2x5x256xbf16, #tpu.memory_space<vmem>>, vector<1x5x256xbf16>
    %62 = vector.shape_cast %61 : vector<1x5x256xbf16> to vector<5x256xbf16>
    %cst_37 = arith.constant dense<0.000000e+00> : vector<16x256xf32>
    %63 = tpu.matmul %60, %62, %cst_37 {dimension_numbers = #tpu.dot_dimension_numbers<[1], [0], [0], [1], [0, 0, 1, 1], [], []>} : vector<16x5xbf16>, vector<5x256xbf16>, vector<16x256xf32> -> vector<16x256xf32>
    %cst_38 = arith.constant 0.000000e+00 : f32
    %64 = vector.broadcast %cst_38 : f32 to vector<16x256xf32>
    %65 = arith.maximumf %63, %64 : vector<16x256xf32>
    %c4_39 = arith.constant 4 : index
    %c0_40 = arith.constant 0 : index
    %c0_41 = arith.constant 0 : index
    %66 = vector.load %arg3[%c4_39, %c0_40, %c0_41] : memref<9x16x256xf32, #tpu.memory_space<vmem>>, vector<1x16x256xf32>
    %67 = vector.shape_cast %66 : vector<1x16x256xf32> to vector<16x256xf32>
    %68 = arith.mulf %65, %67 : vector<16x256xf32>
    %c17_i32_42 = arith.constant 17 : i32
    %69 = tpu.dynamic_rotate %65 by %c17_i32_42 dim 1 : vector<16x256xf32>, i32 -> vector<16x256xf32>
    %c0_43 = arith.constant 0 : index
    %c0_44 = arith.constant 0 : index
    %c0_45 = arith.constant 0 : index
    %70 = vector.load %arg3[%c0_43, %c0_44, %c0_45] : memref<9x16x256xf32, #tpu.memory_space<vmem>>, vector<1x16x256xf32>
    %71 = vector.shape_cast %70 : vector<1x16x256xf32> to vector<16x256xf32>
    %72 = arith.mulf %69, %71 : vector<16x256xf32>
    %73 = arith.addf %68, %72 : vector<16x256xf32>
    %c16_i32_46 = arith.constant 16 : i32
    %74 = tpu.dynamic_rotate %65 by %c16_i32_46 dim 1 : vector<16x256xf32>, i32 -> vector<16x256xf32>
    %c1_47 = arith.constant 1 : index
    %c0_48 = arith.constant 0 : index
    %c0_49 = arith.constant 0 : index
    %75 = vector.load %arg3[%c1_47, %c0_48, %c0_49] : memref<9x16x256xf32, #tpu.memory_space<vmem>>, vector<1x16x256xf32>
    %76 = vector.shape_cast %75 : vector<1x16x256xf32> to vector<16x256xf32>
    %77 = arith.mulf %74, %76 : vector<16x256xf32>
    %78 = arith.addf %73, %77 : vector<16x256xf32>
    %c15_i32_50 = arith.constant 15 : i32
    %79 = tpu.dynamic_rotate %65 by %c15_i32_50 dim 1 : vector<16x256xf32>, i32 -> vector<16x256xf32>
    %c2_51 = arith.constant 2 : index
    %c0_52 = arith.constant 0 : index
    %c0_53 = arith.constant 0 : index
    %80 = vector.load %arg3[%c2_51, %c0_52, %c0_53] : memref<9x16x256xf32, #tpu.memory_space<vmem>>, vector<1x16x256xf32>
    %81 = vector.shape_cast %80 : vector<1x16x256xf32> to vector<16x256xf32>
    %82 = arith.mulf %79, %81 : vector<16x256xf32>
    %83 = arith.addf %78, %82 : vector<16x256xf32>
    %c1_i32_54 = arith.constant 1 : i32
    %84 = tpu.dynamic_rotate %65 by %c1_i32_54 dim 1 : vector<16x256xf32>, i32 -> vector<16x256xf32>
    %c3_55 = arith.constant 3 : index
    %c0_56 = arith.constant 0 : index
    %c0_57 = arith.constant 0 : index
    %85 = vector.load %arg3[%c3_55, %c0_56, %c0_57] : memref<9x16x256xf32, #tpu.memory_space<vmem>>, vector<1x16x256xf32>
    %86 = vector.shape_cast %85 : vector<1x16x256xf32> to vector<16x256xf32>
    %87 = arith.mulf %84, %86 : vector<16x256xf32>
    %88 = arith.addf %83, %87 : vector<16x256xf32>
    %c255_i32_58 = arith.constant 255 : i32
    %89 = tpu.dynamic_rotate %65 by %c255_i32_58 dim 1 : vector<16x256xf32>, i32 -> vector<16x256xf32>
    %c5_59 = arith.constant 5 : index
    %c0_60 = arith.constant 0 : index
    %c0_61 = arith.constant 0 : index
    %90 = vector.load %arg3[%c5_59, %c0_60, %c0_61] : memref<9x16x256xf32, #tpu.memory_space<vmem>>, vector<1x16x256xf32>
    %91 = vector.shape_cast %90 : vector<1x16x256xf32> to vector<16x256xf32>
    %92 = arith.mulf %89, %91 : vector<16x256xf32>
    %93 = arith.addf %88, %92 : vector<16x256xf32>
    %c241_i32_62 = arith.constant 241 : i32
    %94 = tpu.dynamic_rotate %65 by %c241_i32_62 dim 1 : vector<16x256xf32>, i32 -> vector<16x256xf32>
    %c6_63 = arith.constant 6 : index
    %c0_64 = arith.constant 0 : index
    %c0_65 = arith.constant 0 : index
    %95 = vector.load %arg3[%c6_63, %c0_64, %c0_65] : memref<9x16x256xf32, #tpu.memory_space<vmem>>, vector<1x16x256xf32>
    %96 = vector.shape_cast %95 : vector<1x16x256xf32> to vector<16x256xf32>
    %97 = arith.mulf %94, %96 : vector<16x256xf32>
    %98 = arith.addf %93, %97 : vector<16x256xf32>
    %c240_i32_66 = arith.constant 240 : i32
    %99 = tpu.dynamic_rotate %65 by %c240_i32_66 dim 1 : vector<16x256xf32>, i32 -> vector<16x256xf32>
    %c7_67 = arith.constant 7 : index
    %c0_68 = arith.constant 0 : index
    %c0_69 = arith.constant 0 : index
    %100 = vector.load %arg3[%c7_67, %c0_68, %c0_69] : memref<9x16x256xf32, #tpu.memory_space<vmem>>, vector<1x16x256xf32>
    %101 = vector.shape_cast %100 : vector<1x16x256xf32> to vector<16x256xf32>
    %102 = arith.mulf %99, %101 : vector<16x256xf32>
    %103 = arith.addf %98, %102 : vector<16x256xf32>
    %c239_i32_70 = arith.constant 239 : i32
    %104 = tpu.dynamic_rotate %65 by %c239_i32_70 dim 1 : vector<16x256xf32>, i32 -> vector<16x256xf32>
    %c8_71 = arith.constant 8 : index
    %c0_72 = arith.constant 0 : index
    %c0_73 = arith.constant 0 : index
    %105 = vector.load %arg3[%c8_71, %c0_72, %c0_73] : memref<9x16x256xf32, #tpu.memory_space<vmem>>, vector<1x16x256xf32>
    %106 = vector.shape_cast %105 : vector<1x16x256xf32> to vector<16x256xf32>
    %107 = arith.mulf %104, %106 : vector<16x256xf32>
    %108 = arith.addf %103, %107 : vector<16x256xf32>
    %c0_74 = arith.constant 0 : index
    %c0_75 = arith.constant 0 : index
    %109 = vector.load %arg4[%c0_74, %c0_75] : memref<16x1xf32, #tpu.memory_space<vmem>>, vector<16x1xf32>
    %110 = vector.broadcast %109 : vector<16x1xf32> to vector<16x256xf32>
    %111 = arith.addf %108, %110 : vector<16x256xf32>
    %cst_76 = arith.constant 0.000000e+00 : f32
    %112 = vector.broadcast %cst_76 : f32 to vector<16x256xf32>
    %113 = arith.maximumf %111, %112 : vector<16x256xf32>
    %c1_77 = arith.constant 1 : index
    %c0_78 = arith.constant 0 : index
    %c0_79 = arith.constant 0 : index
    %114 = vector.load %arg5[%c1_77, %c0_78, %c0_79] : memref<2x32x256xf32, #tpu.memory_space<vmem>>, vector<1x16x256xf32>
    %115 = vector.shape_cast %114 : vector<1x16x256xf32> to vector<16x256xf32>
    %116 = vector.shape_cast %65 : vector<16x256xf32> to vector<1x16x256xf32>
    tpu.vector_store %arg5[%c1_77, %c0_78, %c0_79], %116 {strides = array<i32>} : memref<2x32x256xf32, #tpu.memory_space<vmem>>, vector<1x16x256xf32>,
    %c1_80 = arith.constant 1 : index
    %c16_81 = arith.constant 16 : index
    %c0_82 = arith.constant 0 : index
    %117 = vector.load %arg5[%c1_80, %c16_81, %c0_82] : memref<2x32x256xf32, #tpu.memory_space<vmem>>, vector<1x16x256xf32>
    %118 = vector.shape_cast %117 : vector<1x16x256xf32> to vector<16x256xf32>
    %119 = vector.shape_cast %113 : vector<16x256xf32> to vector<1x16x256xf32>
    tpu.vector_store %arg5[%c1_80, %c16_81, %c0_82], %119 {strides = array<i32>} : memref<2x32x256xf32, #tpu.memory_space<vmem>>, vector<1x16x256xf32>,
    return
  }
  func.func @transform_0(%arg0: i32) -> (i32, i32, i32) {
    %c0_i32 = arith.constant 0 : i32
    %c0_i32_0 = arith.constant 0 : i32
    %c0_i32_1 = arith.constant 0 : i32
    return %arg0, %c0_i32, %c0_i32_0 : i32, i32, i32
  }
  func.func @transform_1(%arg0: i32) -> (i32, i32) {
    %c0_i32 = arith.constant 0 : i32
    %c0_i32_0 = arith.constant 0 : i32
    %c0_i32_1 = arith.constant 0 : i32
    return %c0_i32, %c0_i32_0 : i32, i32
  }
  func.func @transform_2(%arg0: i32) -> (i32, i32, i32) {
    %c0_i32 = arith.constant 0 : i32
    %c0_i32_0 = arith.constant 0 : i32
    %c0_i32_1 = arith.constant 0 : i32
    %c0_i32_2 = arith.constant 0 : i32
    return %c0_i32, %c0_i32_0, %c0_i32_1 : i32, i32, i32
  }
  func.func @transform_3(%arg0: i32) -> (i32, i32) {
    %c0_i32 = arith.constant 0 : i32
    %c0_i32_0 = arith.constant 0 : i32
    %c0_i32_1 = arith.constant 0 : i32
    return %c0_i32, %c0_i32_0 : i32, i32
  }
  func.func @transform_4(%arg0: i32) -> (i32, i32, i32) {
    %c0_i32 = arith.constant 0 : i32
    %c0_i32_0 = arith.constant 0 : i32
    %c0_i32_1 = arith.constant 0 : i32
    return %arg0, %c0_i32, %c0_i32_0 : i32, i32, i32
  }
}

</mosaic_0001>

<llo_original>
// kernel: ghost_module_forward.1
$region0: #{ghost_module_forward.1}
  #allocation0 [shape = 'u32[]', space=smem, size = 0x4, offset = 0x4, fixed_abs, tag = 'smem constant byte address 0x4 - core index']
  #allocation1 [shape = 'u32[144,128]{1,0:T(1,128)}', space=vmem, size = 0x12000, scoped, tag = 'internal scratch']
  %s0 = inlined_call_operand.vmem [shape: bf16[4,5,256], index: 0, kind: input, shape index: {}]
  %s1 = inlined_call_operand.vmem [shape: bf16[16,5], index: 1, kind: input, shape index: {}]
  %s2 = inlined_call_operand.vmem [shape: f32[9,16,256], index: 2, kind: input, shape index: {}]
  %s3 = inlined_call_operand.vmem [shape: f32[16,1], index: 3, kind: input, shape index: {}]
  %s4 = inlined_call_operand.vmem [shape: f32[4,32,256], index: 4, kind: output, shape index: {}]
  %s5 = sld [smem:[#allocation0]]
  $region49: #{ghost_module_forward.1} parent=0
    _
  %s7 = ssub.s32 1, %s5
  %s8 = scalar_select 0, %s7, %s5
  loop: start=0, step=1, limit=4
  $region2: #{ghost_module_forward.1} parent=0 // loop_pre_header
    _
  $region3: #{ghost_module_forward.1} parent=0 // loop_header
    %s10 = sphi 0, %s14
    %p11 = scmp.ge.s32.totalorder %s10, 4
    %s20 = sphi 0, %s22
    %s23 = sphi 0, %s20
    %s24 = sphi 0, %s23
    %s40 = sphi 0, %s24
    %s44 = sphi 0, %s44
    %s46 = sphi 0, %s44
    %s47 = sphi 0, %s46
    %s61 = sphi 0, %s47
    %s65 = sphi 0, %s65
    %s67 = sphi 0, %s65
    %s68 = sphi 0, %s67
    %s82 = sphi 0, %s68
    %s86 = sphi 0, %s86
    %s88 = sphi 0, %s86
    %s89 = sphi 0, %s88
    %s103 = sphi 0, %s89
    %s109 = sphi 0, %s111
    %s112 = sphi 0, %s109
    %s113 = sphi 0, %s112
    %s129 = sphi 0, %s113
  $region4: #{ghost_module_forward.1} parent=0 // loop_header_branch
    %13 = sbr.rel (%p11) target = $region8
  $region5: #{ghost_module_forward.1} parent=0 // loop_body
    %s15 = ssub.s32 %s10, 1
    %s16 = ssub.s32 %s10, 2
    %s17 = sadd.s32 %s10, 1
    %s18 = ssub.s32 %s10, %s17
    %p19 = scmp.eq.s32.totalorder %s18, 0
    %s21 = sadd.s32 %s20, 1
    %s22 = scalar_select %p19, %s20, %s21
    %p25 = pneg %p19
    %p26 = scmp.eq.s32.totalorder %s10, 1
    %p27 = por %p25, %p26
    %p28 = scmp.ne.s32.totalorder %s20, %s23
    %p29 = scmp.eq.s32.totalorder %s10, 0
    %p30 = por %p28, %p29
    %p31 = scmp.ne.s32.totalorder %s20, %s23
    %p32 = scmp.eq.s32.totalorder %s15, 1
    %p33 = por %p31, %p32
    %p34 = scmp.ne.s32.totalorder %s23, %s24
    %p35 = scmp.eq.s32.totalorder %s15, 0
    %p36 = por %p34, %p35
    %p37 = scmp.ne.s32.totalorder %s23, %s24
    %p38 = scmp.eq.s32.totalorder %s16, 1
    %p39 = por %p37, %p38
    %p41 = scmp.ne.s32.totalorder %s24, %s40
    %p42 = scmp.eq.s32.totalorder %s16, 0
    %p43 = por %p41, %p42
    %s45 = sadd.s32 %s44, 1
    %p48 = scmp.eq.s32.totalorder %s10, 1
    %p49 = scmp.ne.s32.totalorder %s44, %s46
    %p50 = scmp.eq.s32.totalorder %s10, 0
    %p51 = por %p49, %p50
    %p52 = scmp.ne.s32.totalorder %s44, %s46
    %p53 = scmp.eq.s32.totalorder %s15, 1
    %p54 = por %p52, %p53
    %p55 = scmp.ne.s32.totalorder %s46, %s47
    %p56 = scmp.eq.s32.totalorder %s15, 0
    %p57 = por %p55, %p56
    %p58 = scmp.ne.s32.totalorder %s46, %s47
    %p59 = scmp.eq.s32.totalorder %s16, 1
    %p60 = por %p58, %p59
    %p62 = scmp.ne.s32.totalorder %s47, %s61
    %p63 = scmp.eq.s32.totalorder %s16, 0
    %p64 = por %p62, %p63
    %s66 = sadd.s32 %s65, 1
    %p69 = scmp.eq.s32.totalorder %s10, 1
    %p70 = scmp.ne.s32.totalorder %s65, %s67
    %p71 = scmp.eq.s32.totalorder %s10, 0
    %p72 = por %p70, %p71
    %p73 = scmp.ne.s32.totalorder %s65, %s67
    %p74 = scmp.eq.s32.totalorder %s15, 1
    %p75 = por %p73, %p74
    %p76 = scmp.ne.s32.totalorder %s67, %s68
    %p77 = scmp.eq.s32.totalorder %s15, 0
    %p78 = por %p76, %p77
    %p79 = scmp.ne.s32.totalorder %s67, %s68
    %p80 = scmp.eq.s32.totalorder %s16, 1
    %p81 = por %p79, %p80
    %p83 = scmp.ne.s32.totalorder %s68, %s82
    %p84 = scmp.eq.s32.totalorder %s16, 0
    %p85 = por %p83, %p84
    %s87 = sadd.s32 %s86, 1
    %p90 = scmp.eq.s32.totalorder %s10, 1
    %p91 = scmp.ne.s32.totalorder %s86, %s88
    %p92 = scmp.eq.s32.totalorder %s10, 0
    %p93 = por %p91, %p92
    %p94 = scmp.ne.s32.totalorder %s86, %s88
    %p95 = scmp.eq.s32.totalorder %s15, 1
    %p96 = por %p94, %p95
    %p97 = scmp.ne.s32.totalorder %s88, %s89
    %p98 = scmp.eq.s32.totalorder %s15, 0
    %p99 = por %p97, %p98
    %p100 = scmp.ne.s32.totalorder %s88, %s89
    %p101 = scmp.eq.s32.totalorder %s16, 1
    %p102 = por %p100, %p101
    %p104 = scmp.ne.s32.totalorder %s89, %s103
    %p105 = scmp.eq.s32.totalorder %s16, 0
    %p106 = por %p104, %p105
    %s107 = ssub.s32 %s10, %s17
    %p108 = scmp.eq.s32.totalorder %s107, 0
    %s110 = sadd.s32 %s109, 1
    %s111 = scalar_select %p108, %s109, %s110
    %p114 = pneg %p108
    %p115 = scmp.eq.s32.totalorder %s10, 1
    %p116 = por %p114, %p115
    %p117 = scmp.ne.s32.totalorder %s109, %s112
    %p118 = scmp.eq.s32.totalorder %s10, 0
    %p119 = por %p117, %p118
    %p120 = scmp.ne.s32.totalorder %s109, %s112
    %p121 = scmp.eq.s32.totalorder %s15, 1
    %p122 = por %p120, %p121
    %p123 = scmp.ne.s32.totalorder %s112, %s113
    %p124 = scmp.eq.s32.totalorder %s15, 0
    %p125 = por %p123, %p124
    %p126 = scmp.ne.s32.totalorder %s112, %s113
    %p127 = scmp.eq.s32.totalorder %s16, 1
    %p128 = por %p126, %p127
    %p130 = scmp.ne.s32.totalorder %s113, %s129
    %p131 = scmp.eq.s32.totalorder %s16, 0
    %p132 = por %p130, %p131
    %p133 = scmp.le.s32.totalorder 1, %s10
    %p134 = scmp.lt.s32.totalorder %s10, 3
    %p135 = pnand %p133, %p134
    %p136 = pneg %p135
    // Predicated region
    $region9: #{ghost_module_forward.1} parent=5 // pred_check
      _
    $region10: #{ghost_module_forward.1} parent=5 // pred_check_branch
      %138 = sbr.rel (%p135) target = $region12
    $region11: #{ghost_module_forward.1} parent=5 // pred_region
      %s139 = ssub.s32 %s10, 1
      // Predicated region
      $region13: #{ghost_module_forward.1} parent=11 // pred_check
        %p140 = pneg %p57
      $region14: #{ghost_module_forward.1} parent=11 // pred_check_branch
        %142 = sbr.rel (%p140) target = $region16
      $region15: #{ghost_module_forward.1} parent=11 // pred_region
        _
      $region16: #{ghost_module_forward.1} parent=11 // pred_fallthru
        _
      // Predicated region
      $region17: #{ghost_module_forward.1} parent=11 // pred_check
        %p143 = pneg %p78
      $region18: #{ghost_module_forward.1} parent=11 // pred_check_branch
        %145 = sbr.rel (%p143) target = $region20
      $region19: #{ghost_module_forward.1} parent=11 // pred_region
        _
      $region20: #{ghost_module_forward.1} parent=11 // pred_fallthru
        _
      // Predicated region
      $region21: #{ghost_module_forward.1} parent=11 // pred_check
        %p146 = pneg %p99
      $region22: #{ghost_module_forward.1} parent=11 // pred_check_branch
        %148 = sbr.rel (%p146) target = $region24
      $region23: #{ghost_module_forward.1} parent=11 // pred_region
        _
      $region24: #{ghost_module_forward.1} parent=11 // pred_fallthru
        _
    $region12: #{ghost_module_forward.1} parent=5 // pred_fallthru
      _
    %p149 = scmp.lt.s32.totalorder %s10, 2
    // Predicated region
    $region25: #{ghost_module_forward.1} parent=5 // pred_check
      %p150 = pneg %p149
    $region26: #{ghost_module_forward.1} parent=5 // pred_check_branch
      %152 = sbr.rel (%p150) target = $region28
    $region27: #{ghost_module_forward.1} parent=5 // pred_region
      // Predicated region
      $region29: #{ghost_module_forward.1} parent=27 // pred_check
        %p153 = pneg %p30
      $region30: #{ghost_module_forward.1} parent=27 // pred_check_branch
        %155 = sbr.rel (%p153) target = $region32
      $region31: #{ghost_module_forward.1} parent=27 // pred_region
        %s156 = smul.u32 2, %s10
        %p157 = scmp.lt.s32.totalorder %s156, 3
        %s158 = scalar_select %p157, %s156, 3
        %s159 = smul.addr %s158, 2
        %s160 = smul.addr %s159, 4
        %s161 = scalar_lea.vmem %s0, %s160
        %s162 = smul.u32 2, %s10
      $region32: #{ghost_module_forward.1} parent=27 // pred_fallthru
        _
    $region28: #{ghost_module_forward.1} parent=5 // pred_fallthru
      _
    %p163 = scmp.le.s32.totalorder 1, %s10
    %p164 = scmp.lt.s32.totalorder %s10, 3
    %p165 = pnand %p163, %p164
    %p166 = pneg %p165
    // Predicated region
    $region33: #{ghost_module_forward.1} parent=5 // pred_check
      _
    $region34: #{ghost_module_forward.1} parent=5 // pred_check_branch
      %168 = sbr.rel (%p165) target = $region36
    $region35: #{ghost_module_forward.1} parent=5 // pred_region
      %s169 = ssub.s32 %s10, 1
      %s170 = smul.u32 2, %s15
      %p171 = scmp.lt.s32.totalorder %s170, 3
      %s172 = scalar_select %p171, %s170, 3
      %s173 = smul.addr %s172, 2
      %s174 = smul.addr %s173, 4
      %s175 = scalar_lea.vmem %s0, %s174
      %p176 = pneg %p36
      %p177 = pneg %p33
      %p178 = pneg %p57
      %p179 = pneg %p54
      %p180 = pneg %p78
      %p181 = pneg %p75
      %p182 = pneg %p99
      %p183 = pneg %p96
      %p184 = pneg %p125
      %p185 = pneg %p122
      %s186 = smul.u32 2, %s15
      %p187 = scmp.lt.s32.totalorder %s186, 3
      %s188 = scalar_select %p187, %s186, 3
      %s189 = smul.addr %s188, 8
      %s190 = smul.addr %s189, 8
      %s191 = scalar_lea.vmem %s4, %s190
      %s192 = smul.u32 2, %s15
      %p193 = scmp.lt.s32.totalorder %s192, 3
      %s194 = scalar_select %p193, %s192, 3
      %s195 = smul.addr %s194, 2
      %s196 = smul.addr %s195, 4
      %s197 = scalar_lea.vmem %s0, %s196
      %s198 = smul.u32 2, %s15
      %s199 = smul.u32 2, %s15
      %p200 = scmp.lt.s32.totalorder %s199, 3
      %s201 = scalar_select %p200, %s199, 3
      %s202 = smul.addr %s201, 8
      %s203 = smul.addr %s202, 8
      %s204 = scalar_lea.vmem %s4, %s203
      %s205 = smul.u32 2, %s15
      %v207 = vld [vmem:[%s1] sm:$0xf]
      %v208 = vld [vmem:[%s1 + $0x4] sm:$0xf]
      %v209 = vld [vmem:[%s197] sm:$0x77]
      %v212 = vunpack.c.l.b16 %v207
      %v213 = vunpack.c.l.b16 %v208
      %v214 = vpack.c.b16 %v213, %v212
      %v216 = vunpack.c.l.b16 %v209
      %v217 = vunpack.c.h.b16 %v209
      %v218 = vpack.c.b16 %v216, %v216
      %v219 = vpack.c.b16 %v217, %v217
      %vm220 = vcmask 39936
      %v222 = vsel %vm220, %v214, 0
      %vm224 = vcmask 1041408
      %vm225 = vcmask 1042432
      %v226 = vsel %vm224, 4294967295, 65535
      %v227 = vsel %vm225, %v226, 0
      %v229 = vand.u32 %v218, %v227
      %v232 = vand.u32 %v219, %v227
      %234 = vmatprep.subr.bf16.mxu0 0
      %235 = vmatpush1.bf16.msra.mxu0 0
      %236 = vmatprep.subr.bf16.mxu0 0
      %237 = vmatpush1.bf16.msra.mxu0 0
      %238 = vmatprep.subr.bf16.mxu0 0
      %239 = vmatpush1.bf16.msra.mxu0 0
      %240 = vmatprep.subr.bf16.mxu0 0
      %241 = vmatpush1.bf16.msra.mxu0 0
      %242 = vmatprep.subr.bf16.mxu0 0
      %243 = vmatpush1.bf16.msra.mxu0 0
      %244 = vmatprep.subr.bf16.mxu0 0
      %245 = vmatpush1.bf16.msra.mxu0 0
      %246 = vmatprep.subr.bf16.mxu0 0
      %247 = vmatpush1.bf16.msra.mxu0 0
      %248 = vmatprep.subr.bf16.mxu0 %v232
      %249 = vmatpush1.bf16.msra.mxu0 %v229
      %250 = vmatprep.subr.bf16.mxu0 0
      %251 = vmatpush2.bf16.msra.mxu0 0
      %252 = vmatprep.subr.bf16.mxu0 0
      %253 = vmatpush2.bf16.msra.mxu0 0
      %254 = vmatprep.subr.bf16.mxu0 0
      %255 = vmatpush2.bf16.msra.mxu0 0
      %256 = vmatprep.subr.bf16.mxu0 0
      %257 = vmatpush2.bf16.msra.mxu0 0
      %258 = vmatprep.subr.bf16.mxu0 0
      %259 = vmatpush2.bf16.msra.mxu0 0
      %260 = vmatprep.subr.bf16.mxu0 0
      %261 = vmatpush2.bf16.msra.mxu0 0
      %262 = vmatprep.subr.bf16.mxu0 0
      %263 = vmatpush2.bf16.msra.mxu0 0
      %264 = vmatprep.subr.bf16.mxu0 0
      %265 = vmatpush2.bf16.msra.mxu0 0
      %266 = vmatprep.mubr.bf16.mxu0 0
      %267 = vmatmul.mubr.bf16.gmra.mxu0 %v222
      %v268 = vpop.f32.mrf.mxu0
      %v269 = vadd.f32 0.0, %v268
      %v270 = vpop.f32.mrf.mxu0
      %v271 = vadd.f32 0.0, %v270
      %v272 = vpop.f32.mrf.mxu0
      %v273 = vadd.f32 0.0, %v272
      %v274 = vpop.f32.mrf.mxu0
      %v275 = vadd.f32 0.0, %v274
      %276 = vdwg.mxu0
      %v277 = vmax.f32 %v269, 0.0
      %v278 = vmax.f32 %v271, 0.0
      %v279 = vmax.f32 %v273, 0.0
      %v280 = vmax.f32 %v275, 0.0
      %s281 = scalar_lea.vmem %s2, 128
      %v282 = vld [vmem:[%s281] sm:$0xff]
      %v283 = vld [vmem:[%s281 + $0x8] sm:$0xff]
      %v284 = vld [vmem:[%s281 + $0x10] sm:$0xff]
      %v285 = vld [vmem:[%s281 + $0x18] sm:$0xff]
      %v286 = vmul.f32 %v277, %v282
      %v287 = vmul.f32 %v278, %v283
      %v288 = vmul.f32 %v279, %v284
      %v289 = vmul.f32 %v280, %v285
      %290 = vrot.lane.b32.xlu0 %v277, 17
      %v291 = vpop.permute.xlu0 %290
      %292 = vrot.lane.b32.xlu0 %v279, 17
      %v293 = vpop.permute.xlu0 %292
      %294 = vrot.lane.b32.xlu0 %v278, 17
      %v295 = vpop.permute.xlu0 %294
      %296 = vrot.lane.b32.xlu0 %v280, 17
      %v297 = vpop.permute.xlu0 %296
      %v298 = vlaneseq
      %v299 = vand.u32 %v298, 127
      %vm300 = vcmp.lt.s32.totalorder %v299, 17
      %v301 = vsel %vm300, %v291, %v295
      %v302 = vsel %vm300, %v293, %v297
      %v303 = vsel %vm300, %v295, %v291
      %v304 = vsel %vm300, %v297, %v293
      %v305 = vld [vmem:[%s2] sm:$0xff]
      %v306 = vld [vmem:[%s2 + $0x8] sm:$0xff]
      %v307 = vld [vmem:[%s2 + $0x10] sm:$0xff]
      %v308 = vld [vmem:[%s2 + $0x18] sm:$0xff]
      %v309 = vmul.f32 %v303, %v305
      %v310 = vmul.f32 %v301, %v306
      %v311 = vmul.f32 %v304, %v307
      %v312 = vmul.f32 %v302, %v308
      %v313 = vadd.f32 %v286, %v309
      %v314 = vadd.f32 %v287, %v310
      %v315 = vadd.f32 %v288, %v311
      %v316 = vadd.f32 %v289, %v312
      %317 = vrot.lane.b32.xlu0 %v277, 16
      %v318 = vpop.permute.xlu0 %317
      %319 = vrot.lane.b32.xlu0 %v279, 16
      %v320 = vpop.permute.xlu0 %319
      %321 = vrot.lane.b32.xlu0 %v278, 16
      %v322 = vpop.permute.xlu0 %321
      %323 = vrot.lane.b32.xlu0 %v280, 16
      %v324 = vpop.permute.xlu0 %323
      %vm325 = vcmp.lt.s32.totalorder %v299, 16
      %v326 = vsel %vm325, %v318, %v322
      %v327 = vsel %vm325, %v320, %v324
      %v328 = vsel %vm325, %v322, %v318
      %v329 = vsel %vm325, %v324, %v320
      %s330 = scalar_lea.vmem %s2, 32
      %v331 = vld [vmem:[%s330] sm:$0xff]
      %v332 = vld [vmem:[%s330 + $0x8] sm:$0xff]
      %v333 = vld [vmem:[%s330 + $0x10] sm:$0xff]
      %v334 = vld [vmem:[%s330 + $0x18] sm:$0xff]
      %v335 = vmul.f32 %v328, %v331
      %v336 = vmul.f32 %v326, %v332
      %v337 = vmul.f32 %v329, %v333
      %v338 = vmul.f32 %v327, %v334
      %v339 = vadd.f32 %v313, %v335
      %v340 = vadd.f32 %v314, %v336
      %v341 = vadd.f32 %v315, %v337
      %v342 = vadd.f32 %v316, %v338
      %343 = vrot.lane.b32.xlu0 %v277, 15
      %v344 = vpop.permute.xlu0 %343
      %345 = vrot.lane.b32.xlu0 %v279, 15
      %v346 = vpop.permute.xlu0 %345
      %347 = vrot.lane.b32.xlu0 %v278, 15
      %v348 = vpop.permute.xlu0 %347
      %349 = vrot.lane.b32.xlu0 %v280, 15
      %v350 = vpop.permute.xlu0 %349
      %vm351 = vcmp.lt.s32.totalorder %v299, 15
      %v352 = vsel %vm351, %v344, %v348
      %v353 = vsel %vm351, %v346, %v350
      %v354 = vsel %vm351, %v348, %v344
      %v355 = vsel %vm351, %v350, %v346
      %s356 = scalar_lea.vmem %s2, 64
      %v357 = vld [vmem:[%s356] sm:$0xff]
      %v358 = vld [vmem:[%s356 + $0x8] sm:$0xff]
      %v359 = vld [vmem:[%s356 + $0x10] sm:$0xff]
      %v360 = vld [vmem:[%s356 + $0x18] sm:$0xff]
      %v361 = vmul.f32 %v354, %v357
      %v362 = vmul.f32 %v352, %v358
      %v363 = vmul.f32 %v355, %v359
      %v364 = vmul.f32 %v353, %v360
      %v365 = vadd.f32 %v339, %v361
      %v366 = vadd.f32 %v340, %v362
      %v367 = vadd.f32 %v341, %v363
      %v368 = vadd.f32 %v342, %v364
      %369 = vrot.lane.b32.xlu0 %v277, 1
      %v370 = vpop.permute.xlu0 %369
      %371 = vrot.lane.b32.xlu0 %v279, 1
      %v372 = vpop.permute.xlu0 %371
      %373 = vrot.lane.b32.xlu0 %v278, 1
      %v374 = vpop.permute.xlu0 %373
      %375 = vrot.lane.b32.xlu0 %v280, 1
      %v376 = vpop.permute.xlu0 %375
      %vm377 = vcmp.lt.s32.totalorder %v299, 1
      %v378 = vsel %vm377, %v370, %v374
      %v379 = vsel %vm377, %v372, %v376
      %v380 = vsel %vm377, %v374, %v370
      %v381 = vsel %vm377, %v376, %v372
      %s382 = scalar_lea.vmem %s2, 96
      %v383 = vld [vmem:[%s382] sm:$0xff]
      %v384 = vld [vmem:[%s382 + $0x8] sm:$0xff]
      %v385 = vld [vmem:[%s382 + $0x10] sm:$0xff]
      %v386 = vld [vmem:[%s382 + $0x18] sm:$0xff]
      %v387 = vmul.f32 %v380, %v383
      %v388 = vmul.f32 %v378, %v384
      %v389 = vmul.f32 %v381, %v385
      %v390 = vmul.f32 %v379, %v386
      %v391 = vadd.f32 %v365, %v387
      %v392 = vadd.f32 %v366, %v388
      %v393 = vadd.f32 %v367, %v389
      %v394 = vadd.f32 %v368, %v390
      %395 = vrot.lane.b32.xlu0 %v277, 127
      %v396 = vpop.permute.xlu0 %395
      %397 = vrot.lane.b32.xlu0 %v279, 127
      %v398 = vpop.permute.xlu0 %397
      %399 = vrot.lane.b32.xlu0 %v278, 127
      %v400 = vpop.permute.xlu0 %399
      %401 = vrot.lane.b32.xlu0 %v280, 127
      %v402 = vpop.permute.xlu0 %401
      %vm403 = vcmp.lt.s32.totalorder %v299, 127
      %v404 = vsel %vm403, %v396, %v400
      %v405 = vsel %vm403, %v398, %v402
      %v406 = vsel %vm403, %v400, %v396
      %v407 = vsel %vm403, %v402, %v398
      %s408 = scalar_lea.vmem %s2, 160
      %v409 = vld [vmem:[%s408] sm:$0xff]
      %v410 = vld [vmem:[%s408 + $0x8] sm:$0xff]
      %v411 = vld [vmem:[%s408 + $0x10] sm:$0xff]
      %v412 = vld [vmem:[%s408 + $0x18] sm:$0xff]
      %v413 = vmul.f32 %v404, %v409
      %v414 = vmul.f32 %v406, %v410
      %v415 = vmul.f32 %v405, %v411
      %v416 = vmul.f32 %v407, %v412
      %v417 = vadd.f32 %v391, %v413
      %v418 = vadd.f32 %v392, %v414
      %v419 = vadd.f32 %v393, %v415
      %v420 = vadd.f32 %v394, %v416
      %421 = vrot.lane.b32.xlu0 %v277, 113
      %v422 = vpop.permute.xlu0 %421
      %423 = vrot.lane.b32.xlu0 %v279, 113
      %v424 = vpop.permute.xlu0 %423
      %425 = vrot.lane.b32.xlu0 %v278, 113
      %v426 = vpop.permute.xlu0 %425
      %427 = vrot.lane.b32.xlu0 %v280, 113
      %v428 = vpop.permute.xlu0 %427
      %vm429 = vcmp.lt.s32.totalorder %v299, 113
      %v430 = vsel %vm429, %v422, %v426
      %v431 = vsel %vm429, %v424, %v428
      %v432 = vsel %vm429, %v426, %v422
      %v433 = vsel %vm429, %v428, %v424
      %s434 = scalar_lea.vmem %s2, 192
      %v435 = vld [vmem:[%s434] sm:$0xff]
      %v436 = vld [vmem:[%s434 + $0x8] sm:$0xff]
      %v437 = vld [vmem:[%s434 + $0x10] sm:$0xff]
      %v438 = vld [vmem:[%s434 + $0x18] sm:$0xff]
      %v439 = vmul.f32 %v430, %v435
      %v440 = vmul.f32 %v432, %v436
      %v441 = vmul.f32 %v431, %v437
      %v442 = vmul.f32 %v433, %v438
      %v443 = vadd.f32 %v417, %v439
      %v444 = vadd.f32 %v418, %v440
      %v445 = vadd.f32 %v419, %v441
      %v446 = vadd.f32 %v420, %v442
      %447 = vrot.lane.b32.xlu0 %v277, 112
      %v448 = vpop.permute.xlu0 %447
      %449 = vrot.lane.b32.xlu0 %v279, 112
      %v450 = vpop.permute.xlu0 %449
      %451 = vrot.lane.b32.xlu0 %v278, 112
      %v452 = vpop.permute.xlu0 %451
      %453 = vrot.lane.b32.xlu0 %v280, 112
      %v454 = vpop.permute.xlu0 %453
      %vm455 = vcmp.lt.s32.totalorder %v299, 112
      %v456 = vsel %vm455, %v448, %v452
      %v457 = vsel %vm455, %v450, %v454
      %v458 = vsel %vm455, %v452, %v448
      %v459 = vsel %vm455, %v454, %v450
      %s460 = scalar_lea.vmem %s2, 224
      %v461 = vld [vmem:[%s460] sm:$0xff]
      %v462 = vld [vmem:[%s460 + $0x8] sm:$0xff]
      %v463 = vld [vmem:[%s460 + $0x10] sm:$0xff]
      %v464 = vld [vmem:[%s460 + $0x18] sm:$0xff]
      %v465 = vmul.f32 %v456, %v461
      %v466 = vmul.f32 %v458, %v462
      %v467 = vmul.f32 %v457, %v463
      %v468 = vmul.f32 %v459, %v464
      %v469 = vadd.f32 %v443, %v465
      %v470 = vadd.f32 %v444, %v466
      %v471 = vadd.f32 %v445, %v467
      %v472 = vadd.f32 %v446, %v468
      %473 = vrot.lane.b32.xlu0 %v277, 111
      %v474 = vpop.permute.xlu0 %473
      %475 = vrot.lane.b32.xlu0 %v279, 111
      %v476 = vpop.permute.xlu0 %475
      %477 = vrot.lane.b32.xlu0 %v278, 111
      %v478 = vpop.permute.xlu0 %477
      %479 = vrot.lane.b32.xlu0 %v280, 111
      %v480 = vpop.permute.xlu0 %479
      %vm481 = vcmp.lt.s32.totalorder %v299, 111
      %v482 = vsel %vm481, %v474, %v478
      %v483 = vsel %vm481, %v476, %v480
      %v484 = vsel %vm481, %v478, %v474
      %v485 = vsel %vm481, %v480, %v476
      %s486 = scalar_lea.vmem %s2, 256
      %v487 = vld [vmem:[%s486] sm:$0xff]
      %v488 = vld [vmem:[%s486 + $0x8] sm:$0xff]
      %v489 = vld [vmem:[%s486 + $0x10] sm:$0xff]
      %v490 = vld [vmem:[%s486 + $0x18] sm:$0xff]
      %v491 = vmul.f32 %v482, %v487
      %v492 = vmul.f32 %v484, %v488
      %v493 = vmul.f32 %v483, %v489
      %v494 = vmul.f32 %v485, %v490
      %v495 = vadd.f32 %v469, %v491
      %v496 = vadd.f32 %v470, %v492
      %v497 = vadd.f32 %v471, %v493
      %v498 = vadd.f32 %v472, %v494
      %v499 = vld [vmem:[%s3] sm:$0xff]
      %v500 = vld [vmem:[%s3 + $0x8] sm:$0xff]
      %502 = vset.pattern.permute.xlu0 0
      %503 = vperm.xlu0 %502, %v499
      %v504 = vpop.permute.xlu0 %503
      %507 = vset.pattern.permute.xlu0 0
      %508 = vperm.xlu0 %507, %v500
      %v509 = vpop.permute.xlu0 %508
      %v511 = vadd.f32 %v495, %v504
      %v512 = vadd.f32 %v496, %v504
      %v513 = vadd.f32 %v497, %v509
      %v514 = vadd.f32 %v498, %v509
      %v515 = vmax.f32 %v511, 0.0
      %v516 = vmax.f32 %v512, 0.0
      %v517 = vmax.f32 %v513, 0.0
      %v518 = vmax.f32 %v514, 0.0
      %519 = vst [vmem:[%s204] sm:$0xff] %v277
      %520 = vst [vmem:[%s204 + $0x8] sm:$0xff] %v278
      %521 = vst [vmem:[%s204 + $0x10] sm:$0xff] %v279
      %522 = vst [vmem:[%s204 + $0x18] sm:$0xff] %v280
      %523 = vst [vmem:[%s204 + $0x20] sm:$0xff] %v515
      %524 = vst [vmem:[%s204 + $0x28] sm:$0xff] %v516
      %525 = vst [vmem:[%s204 + $0x30] sm:$0xff] %v517
      %526 = vst [vmem:[%s204 + $0x38] sm:$0xff] %v518
      %v527 = vld [vmem:[%s1] sm:$0xf]
      %v528 = vld [vmem:[%s1 + $0x4] sm:$0xf]
      %s529 = scalar_lea.vmem %s197, 8
      %v530 = vld [vmem:[%s529] sm:$0x77]
      %v533 = vunpack.c.l.b16 %v527
      %v534 = vunpack.c.l.b16 %v528
      %v535 = vpack.c.b16 %v534, %v533
      %v537 = vunpack.c.l.b16 %v530
      %v538 = vunpack.c.h.b16 %v530
      %v539 = vpack.c.b16 %v537, %v537
      %v540 = vpack.c.b16 %v538, %v538
      %v542 = vsel %vm220, %v535, 0
      %v545 = vand.u32 %v539, %v227
      %v548 = vand.u32 %v540, %v227
      %550 = vmatprep.subr.bf16.mxu0 0
      %551 = vmatpush1.bf16.msra.mxu0 0
      %552 = vmatprep.subr.bf16.mxu0 0
      %553 = vmatpush1.bf16.msra.mxu0 0
      %554 = vmatprep.subr.bf16.mxu0 0
      %555 = vmatpush1.bf16.msra.mxu0 0
      %556 = vmatprep.subr.bf16.mxu0 0
      %557 = vmatpush1.bf16.msra.mxu0 0
      %558 = vmatprep.subr.bf16.mxu0 0
      %559 = vmatpush1.bf16.msra.mxu0 0
      %560 = vmatprep.subr.bf16.mxu0 0
      %561 = vmatpush1.bf16.msra.mxu0 0
      %562 = vmatprep.subr.bf16.mxu0 0
      %563 = vmatpush1.bf16.msra.mxu0 0
      %564 = vmatprep.subr.bf16.mxu0 %v548
      %565 = vmatpush1.bf16.msra.mxu0 %v545
      %566 = vmatprep.subr.bf16.mxu0 0
      %567 = vmatpush2.bf16.msra.mxu0 0
      %568 = vmatprep.subr.bf16.mxu0 0
      %569 = vmatpush2.bf16.msra.mxu0 0
      %570 = vmatprep.subr.bf16.mxu0 0
      %571 = vmatpush2.bf16.msra.mxu0 0
      %572 = vmatprep.subr.bf16.mxu0 0
      %573 = vmatpush2.bf16.msra.mxu0 0
      %574 = vmatprep.subr.bf16.mxu0 0
      %575 = vmatpush2.bf16.msra.mxu0 0
      %576 = vmatprep.subr.bf16.mxu0 0
      %577 = vmatpush2.bf16.msra.mxu0 0
      %578 = vmatprep.subr.bf16.mxu0 0
      %579 = vmatpush2.bf16.msra.mxu0 0
      %580 = vmatprep.subr.bf16.mxu0 0
      %581 = vmatpush2.bf16.msra.mxu0 0
      %582 = vmatprep.mubr.bf16.mxu0 0
      %583 = vmatmul.mubr.bf16.gmra.mxu0 %v542
      %v584 = vpop.f32.mrf.mxu0
      %v585 = vadd.f32 0.0, %v584
      %v586 = vpop.f32.mrf.mxu0
      %v587 = vadd.f32 0.0, %v586
      %v588 = vpop.f32.mrf.mxu0
      %v589 = vadd.f32 0.0, %v588
      %v590 = vpop.f32.mrf.mxu0
      %v591 = vadd.f32 0.0, %v590
      %592 = vdwg.mxu0
      %v593 = vmax.f32 %v585, 0.0
      %v594 = vmax.f32 %v587, 0.0
      %v595 = vmax.f32 %v589, 0.0
      %v596 = vmax.f32 %v591, 0.0
      %v597 = vld [vmem:[%s281] sm:$0xff]
      %v598 = vld [vmem:[%s281 + $0x8] sm:$0xff]
      %v599 = vld [vmem:[%s281 + $0x10] sm:$0xff]
      %v600 = vld [vmem:[%s281 + $0x18] sm:$0xff]
      %v601 = vmul.f32 %v593, %v597
      %v602 = vmul.f32 %v594, %v598
      %v603 = vmul.f32 %v595, %v599
      %v604 = vmul.f32 %v596, %v600
      %605 = vrot.lane.b32.xlu0 %v593, 17
      %v606 = vpop.permute.xlu0 %605
      %607 = vrot.lane.b32.xlu0 %v595, 17
      %v608 = vpop.permute.xlu0 %607
      %609 = vrot.lane.b32.xlu0 %v594, 17
      %v610 = vpop.permute.xlu0 %609
      %611 = vrot.lane.b32.xlu0 %v596, 17
      %v612 = vpop.permute.xlu0 %611
      %v613 = vsel %vm300, %v606, %v610
      %v614 = vsel %vm300, %v608, %v612
      %v615 = vsel %vm300, %v610, %v606
      %v616 = vsel %vm300, %v612, %v608
      %v617 = vld [vmem:[%s2] sm:$0xff]
      %v618 = vld [vmem:[%s2 + $0x8] sm:$0xff]
      %v619 = vld [vmem:[%s2 + $0x10] sm:$0xff]
      %v620 = vld [vmem:[%s2 + $0x18] sm:$0xff]
      %v621 = vmul.f32 %v615, %v617
      %v622 = vmul.f32 %v613, %v618
      %v623 = vmul.f32 %v616, %v619
      %v624 = vmul.f32 %v614, %v620
      %v625 = vadd.f32 %v601, %v621
      %v626 = vadd.f32 %v602, %v622
      %v627 = vadd.f32 %v603, %v623
      %v628 = vadd.f32 %v604, %v624
      %629 = vrot.lane.b32.xlu0 %v593, 16
      %v630 = vpop.permute.xlu0 %629
      %631 = vrot.lane.b32.xlu0 %v595, 16
      %v632 = vpop.permute.xlu0 %631
      %633 = vrot.lane.b32.xlu0 %v594, 16
      %v634 = vpop.permute.xlu0 %633
      %635 = vrot.lane.b32.xlu0 %v596, 16
      %v636 = vpop.permute.xlu0 %635
      %v637 = vsel %vm325, %v630, %v634
      %v638 = vsel %vm325, %v632, %v636
      %v639 = vsel %vm325, %v634, %v630
      %v640 = vsel %vm325, %v636, %v632
      %v641 = vld [vmem:[%s330] sm:$0xff]
      %v642 = vld [vmem:[%s330 + $0x8] sm:$0xff]
      %v643 = vld [vmem:[%s330 + $0x10] sm:$0xff]
      %v644 = vld [vmem:[%s330 + $0x18] sm:$0xff]
      %v645 = vmul.f32 %v639, %v641
      %v646 = vmul.f32 %v637, %v642
      %v647 = vmul.f32 %v640, %v643
      %v648 = vmul.f32 %v638, %v644
      %v649 = vadd.f32 %v625, %v645
      %v650 = vadd.f32 %v626, %v646
      %v651 = vadd.f32 %v627, %v647
      %v652 = vadd.f32 %v628, %v648
      %653 = vrot.lane.b32.xlu0 %v593, 15
      %v654 = vpop.permute.xlu0 %653
      %655 = vrot.lane.b32.xlu0 %v595, 15
      %v656 = vpop.permute.xlu0 %655
      %657 = vrot.lane.b32.xlu0 %v594, 15
      %v658 = vpop.permute.xlu0 %657
      %659 = vrot.lane.b32.xlu0 %v596, 15
      %v660 = vpop.permute.xlu0 %659
      %v661 = vsel %vm351, %v654, %v658
      %v662 = vsel %vm351, %v656, %v660
      %v663 = vsel %vm351, %v658, %v654
      %v664 = vsel %vm351, %v660, %v656
      %v665 = vld [vmem:[%s356] sm:$0xff]
      %v666 = vld [vmem:[%s356 + $0x8] sm:$0xff]
      %v667 = vld [vmem:[%s356 + $0x10] sm:$0xff]
      %v668 = vld [vmem:[%s356 + $0x18] sm:$0xff]
      %v669 = vmul.f32 %v663, %v665
      %v670 = vmul.f32 %v661, %v666
      %v671 = vmul.f32 %v664, %v667
      %v672 = vmul.f32 %v662, %v668
      %v673 = vadd.f32 %v649, %v669
      %v674 = vadd.f32 %v650, %v670
      %v675 = vadd.f32 %v651, %v671
      %v676 = vadd.f32 %v652, %v672
      %677 = vrot.lane.b32.xlu0 %v593, 1
      %v678 = vpop.permute.xlu0 %677
      %679 = vrot.lane.b32.xlu0 %v595, 1
      %v680 = vpop.permute.xlu0 %679
      %681 = vrot.lane.b32.xlu0 %v594, 1
      %v682 = vpop.permute.xlu0 %681
      %683 = vrot.lane.b32.xlu0 %v596, 1
      %v684 = vpop.permute.xlu0 %683
      %v685 = vsel %vm377, %v678, %v682
      %v686 = vsel %vm377, %v680, %v684
      %v687 = vsel %vm377, %v682, %v678
      %v688 = vsel %vm377, %v684, %v680
      %v689 = vld [vmem:[%s382] sm:$0xff]
      %v690 = vld [vmem:[%s382 + $0x8] sm:$0xff]
      %v691 = vld [vmem:[%s382 + $0x10] sm:$0xff]
      %v692 = vld [vmem:[%s382 + $0x18] sm:$0xff]
      %v693 = vmul.f32 %v687, %v689
      %v694 = vmul.f32 %v685, %v690
      %v695 = vmul.f32 %v688, %v691
      %v696 = vmul.f32 %v686, %v692
      %v697 = vadd.f32 %v673, %v693
      %v698 = vadd.f32 %v674, %v694
      %v699 = vadd.f32 %v675, %v695
      %v700 = vadd.f32 %v676, %v696
      %701 = vrot.lane.b32.xlu0 %v593, 127
      %v702 = vpop.permute.xlu0 %701
      %703 = vrot.lane.b32.xlu0 %v595, 127
      %v704 = vpop.permute.xlu0 %703
      %705 = vrot.lane.b32.xlu0 %v594, 127
      %v706 = vpop.permute.xlu0 %705
      %707 = vrot.lane.b32.xlu0 %v596, 127
      %v708 = vpop.permute.xlu0 %707
      %v709 = vsel %vm403, %v702, %v706
      %v710 = vsel %vm403, %v704, %v708
      %v711 = vsel %vm403, %v706, %v702
      %v712 = vsel %vm403, %v708, %v704
      %v713 = vld [vmem:[%s408] sm:$0xff]
      %v714 = vld [vmem:[%s408 + $0x8] sm:$0xff]
      %v715 = vld [vmem:[%s408 + $0x10] sm:$0xff]
      %v716 = vld [vmem:[%s408 + $0x18] sm:$0xff]
      %v717 = vmul.f32 %v709, %v713
      %v718 = vmul.f32 %v711, %v714
      %v719 = vmul.f32 %v710, %v715
      %v720 = vmul.f32 %v712, %v716
      %v721 = vadd.f32 %v697, %v717
      %v722 = vadd.f32 %v698, %v718
      %v723 = vadd.f32 %v699, %v719
      %v724 = vadd.f32 %v700, %v720
      %725 = vrot.lane.b32.xlu0 %v593, 113
      %v726 = vpop.permute.xlu0 %725
      %727 = vrot.lane.b32.xlu0 %v595, 113
      %v728 = vpop.permute.xlu0 %727
      %729 = vrot.lane.b32.xlu0 %v594, 113
      %v730 = vpop.permute.xlu0 %729
      %731 = vrot.lane.b32.xlu0 %v596, 113
      %v732 = vpop.permute.xlu0 %731
      %v733 = vsel %vm429, %v726, %v730
      %v734 = vsel %vm429, %v728, %v732
      %v735 = vsel %vm429, %v730, %v726
      %v736 = vsel %vm429, %v732, %v728
      %v737 = vld [vmem:[%s434] sm:$0xff]
      %v738 = vld [vmem:[%s434 + $0x8] sm:$0xff]
      %v739 = vld [vmem:[%s434 + $0x10] sm:$0xff]
      %v740 = vld [vmem:[%s434 + $0x18] sm:$0xff]
      %v741 = vmul.f32 %v733, %v737
      %v742 = vmul.f32 %v735, %v738
      %v743 = vmul.f32 %v734, %v739
      %v744 = vmul.f32 %v736, %v740
      %v745 = vadd.f32 %v721, %v741
      %v746 = vadd.f32 %v722, %v742
      %v747 = vadd.f32 %v723, %v743
      %v748 = vadd.f32 %v724, %v744
      %749 = vrot.lane.b32.xlu0 %v593, 112
      %v750 = vpop.permute.xlu0 %749
      %751 = vrot.lane.b32.xlu0 %v595, 112
      %v752 = vpop.permute.xlu0 %751
      %753 = vrot.lane.b32.xlu0 %v594, 112
      %v754 = vpop.permute.xlu0 %753
      %755 = vrot.lane.b32.xlu0 %v596, 112
      %v756 = vpop.permute.xlu0 %755
      %v757 = vsel %vm455, %v750, %v754
      %v758 = vsel %vm455, %v752, %v756
      %v759 = vsel %vm455, %v754, %v750
      %v760 = vsel %vm455, %v756, %v752
      %v761 = vld [vmem:[%s460] sm:$0xff]
      %v762 = vld [vmem:[%s460 + $0x8] sm:$0xff]
      %v763 = vld [vmem:[%s460 + $0x10] sm:$0xff]
      %v764 = vld [vmem:[%s460 + $0x18] sm:$0xff]
      %v765 = vmul.f32 %v757, %v761
      %v766 = vmul.f32 %v759, %v762
      %v767 = vmul.f32 %v758, %v763
      %v768 = vmul.f32 %v760, %v764
      %v769 = vadd.f32 %v745, %v765
      %v770 = vadd.f32 %v746, %v766
      %v771 = vadd.f32 %v747, %v767
      %v772 = vadd.f32 %v748, %v768
      %773 = vrot.lane.b32.xlu0 %v593, 111
      %v774 = vpop.permute.xlu0 %773
      %775 = vrot.lane.b32.xlu0 %v595, 111
      %v776 = vpop.permute.xlu0 %775
      %777 = vrot.lane.b32.xlu0 %v594, 111
      %v778 = vpop.permute.xlu0 %777
      %779 = vrot.lane.b32.xlu0 %v596, 111
      %v780 = vpop.permute.xlu0 %779
      %v781 = vsel %vm481, %v774, %v778
      %v782 = vsel %vm481, %v776, %v780
      %v783 = vsel %vm481, %v778, %v774
      %v784 = vsel %vm481, %v780, %v776
      %v785 = vld [vmem:[%s486] sm:$0xff]
      %v786 = vld [vmem:[%s486 + $0x8] sm:$0xff]
      %v787 = vld [vmem:[%s486 + $0x10] sm:$0xff]
      %v788 = vld [vmem:[%s486 + $0x18] sm:$0xff]
      %v789 = vmul.f32 %v781, %v785
      %v790 = vmul.f32 %v783, %v786
      %v791 = vmul.f32 %v782, %v787
      %v792 = vmul.f32 %v784, %v788
      %v793 = vadd.f32 %v769, %v789
      %v794 = vadd.f32 %v770, %v790
      %v795 = vadd.f32 %v771, %v791
      %v796 = vadd.f32 %v772, %v792
      %v797 = vld [vmem:[%s3] sm:$0xff]
      %v798 = vld [vmem:[%s3 + $0x8] sm:$0xff]
      %800 = vset.pattern.permute.xlu0 0
      %801 = vperm.xlu0 %800, %v797
      %v802 = vpop.permute.xlu0 %801
      %805 = vset.pattern.permute.xlu0 0
      %806 = vperm.xlu0 %805, %v798
      %v807 = vpop.permute.xlu0 %806
      %v809 = vadd.f32 %v793, %v802
      %v810 = vadd.f32 %v794, %v802
      %v811 = vadd.f32 %v795, %v807
      %v812 = vadd.f32 %v796, %v807
      %v813 = vmax.f32 %v809, 0.0
      %v814 = vmax.f32 %v810, 0.0
      %v815 = vmax.f32 %v811, 0.0
      %v816 = vmax.f32 %v812, 0.0
      %s817 = scalar_lea.vmem %s204, 64
      %818 = vst [vmem:[%s817] sm:$0xff] %v593
      %819 = vst [vmem:[%s817 + $0x8] sm:$0xff] %v594
      %820 = vst [vmem:[%s817 + $0x10] sm:$0xff] %v595
      %821 = vst [vmem:[%s817 + $0x18] sm:$0xff] %v596
      %822 = vst [vmem:[%s817 + $0x20] sm:$0xff] %v813
      %823 = vst [vmem:[%s817 + $0x28] sm:$0xff] %v814
      %824 = vst [vmem:[%s817 + $0x30] sm:$0xff] %v815
      %825 = vst [vmem:[%s817 + $0x38] sm:$0xff] %v816
      %s826 = smul.u32 2, %s15
      %p827 = scmp.lt.s32.totalorder %s826, 3
      %s828 = scalar_select %p827, %s826, 3
      %s829 = smul.addr %s828, 8
      %s830 = smul.addr %s829, 8
      %s831 = scalar_lea.vmem %s4, %s830
      // Predicated region
      $region37: #{ghost_module_forward.1} parent=35 // pred_check
        %p832 = pneg %p122
      $region38: #{ghost_module_forward.1} parent=35 // pred_check_branch
        %834 = sbr.rel (%p832) target = $region40
      $region39: #{ghost_module_forward.1} parent=35 // pred_region
        %s835 = smul.u32 2, %s15
      $region40: #{ghost_module_forward.1} parent=35 // pred_fallthru
        _
    $region36: #{ghost_module_forward.1} parent=5 // pred_fallthru
      _
    %p836 = scmp.le.s32.totalorder 2, %s10
    // Predicated region
    $region41: #{ghost_module_forward.1} parent=5 // pred_check
      %p837 = pneg %p836
    $region42: #{ghost_module_forward.1} parent=5 // pred_check_branch
      %839 = sbr.rel (%p837) target = $region44
    $region43: #{ghost_module_forward.1} parent=5 // pred_region
      %s840 = ssub.s32 %s10, 2
      // Predicated region
      $region45: #{ghost_module_forward.1} parent=43 // pred_check
        %p841 = pneg %p128
      $region46: #{ghost_module_forward.1} parent=43 // pred_check_branch
        %843 = sbr.rel (%p841) target = $region48
      $region47: #{ghost_module_forward.1} parent=43 // pred_region
        %s844 = smul.u32 2, %s16
        %p845 = scmp.lt.s32.totalorder %s844, 3
        %s846 = scalar_select %p845, %s844, 3
        %s847 = smul.addr %s846, 8
        %s848 = smul.addr %s847, 8
        %s849 = scalar_lea.vmem %s4, %s848
      $region48: #{ghost_module_forward.1} parent=43 // pred_fallthru
        _
    $region44: #{ghost_module_forward.1} parent=5 // pred_fallthru
      _
  $region6: #{ghost_module_forward.1} parent=0 // loop_footer
    %s14 = sadd.s32 1, %s10
  $region7: #{ghost_module_forward.1} parent=0 // loop_footer_branch
    %9 = sbr.rel target = $region3
  $region8: #{ghost_module_forward.1} parent=0 // loop_exit
    _

</llo_original>
